<compile_context>
chip_gen: v5e
topology: v5e:2x2
jax: 0.10.0
libtpu: 0.0.40
codegen_flags: <defaults>
</compile_context>

<pallas_src>
import functools

import jax
import jax.numpy as jnp
from jax import lax
from jax.experimental import pallas as pl
from jax.experimental.pallas import tpu as pltpu

_EPS = 1e-12
_EPS2 = _EPS * _EPS  # 1e-24 is a normal f32


def _round_up(x, m):
    return ((x + m - 1) // m) * m


def cc_head_kernel(x_ref, w_ref, out_ref, acc_ref, *, hw_total):
    """One (batch tile, HW chunk) grid point.

    x_ref  : (TN, C, THW)  flattened NCHW tile (one spatial chunk)
    w_ref  : (C, O_pad)    scale_cls * g * v/||v||, transposed, zero-padded cols
    out_ref: (TN, O_pad)   written on the last HW chunk only
    acc_ref: (TN, C) f32   spatial-sum accumulator across HW chunks
    """
    h = pl.program_id(1)
    hw_c = x_ref.shape[2]

    @pl.when(h == 0)
    def _init():
        acc_ref[...] = jnp.zeros_like(acc_ref)

    # F.normalize(features, p=2, dim=1, eps=1e-12): per-(n,h,w) L2 norm over C.
    # max(norm, eps) == rsqrt(max(sumsq, eps^2)).  x is read with an inline f32
    # upcast (no persistent full-tile f32 copy kept live).
    c_sumsq = jnp.sum(jnp.square(x_ref[...].astype(jnp.float32)),
                      axis=1, keepdims=True)                      # (TN, 1, THW)
    inv = lax.rsqrt(jnp.maximum(c_sumsq, _EPS2))

    # Mask lanes beyond the true spatial extent (ragged last HW chunk); the
    # select also keeps padding garbage out of the accumulator.
    lane = lax.broadcasted_iota(jnp.int32, (1, 1, hw_c), 2)
    valid = (h * hw_c + lane) < hw_total
    contrib = jnp.where(valid, x_ref[...].astype(jnp.float32) * inv, 0.0)

    # adaptive_avg_pool2d(1): the 1/HW factor cancels under the row-wise L2
    # normalization below, so a plain spatial sum suffices.
    acc_ref[...] += jnp.sum(contrib, axis=2)                      # (TN, C)

    @pl.when(h == pl.num_programs(1) - 1)
    def _finalize():
        pooled = acc_ref[...]
        p_sumsq = jnp.sum(pooled * pooled, axis=-1, keepdims=True)  # (TN, 1)
        x_normalized = pooled * lax.rsqrt(jnp.maximum(p_sumsq, _EPS2))
        # (TN, C) @ (C, O_pad): canonical MXU orientation, scale pre-folded.
        out_ref[...] = lax.dot_general(
            x_normalized, w_ref[...],
            dimension_numbers=(((1,), (0,)), ((), ())),
            preferred_element_type=jnp.float32)


def _footprint_bytes(row_tile, c, hw_chunk, x_itemsize, o_pad):
    """Realistic VMEM plan for one tile, using padded (sublane, lane) dims."""
    sub = {4: 8, 2: 16, 1: 32}.get(x_itemsize, 8)
    c_pad_in = _round_up(c, sub)           # input dtype sublane packing
    c_pad32 = _round_up(c, 8)              # f32 sublane packing
    hw_pad = _round_up(hw_chunk, 128)      # lane padding
    rt8 = _round_up(row_tile, 8)
    x_dma = 2 * row_tile * c_pad_in * hw_pad * x_itemsize   # double-buffered input DMA
    x_work = 2 * row_tile * c_pad32 * hw_pad * 4            # live f32 intermediates (~2 passes)
    acc = rt8 * _round_up(c, 128) * 4                       # pooled accumulator scratch
    out = 2 * rt8 * o_pad * 4                               # double-buffered output
    w = 2 * _round_up(c, 8) * o_pad * 4                     # resident weight (worst case 2 bufs)
    return x_dma + x_work + acc + out + w


def _choose_tiling(n, c, hw, x_itemsize, o_pad, vmem_limit):
    """Pick (row_tile, hw_chunk) so the full VMEM plan fits under the limit."""
    budget = int(vmem_limit * 0.70)        # headroom for Mosaic scratch / spills

    def fits(rt, hwc):
        return _footprint_bytes(rt, c, hwc, x_itemsize, o_pad) <= budget

    # Keep >= 2 steps on the "parallel" N axis when the batch is large enough to
    # split into sublane-aligned tiles — feeds both v7x TensorCores.
    n_cap = n if n < 16 else _round_up(-(-n // 2), 8)

    def best_row_tile(hwc):
        if n <= n_cap and fits(n, hwc):
            return n                       # whole batch in one tile (full dim: layout-legal)
        top = (min(n, n_cap) // 8) * 8
        if top < 8:
            return n if fits(n, hwc) else None
        base = _footprint_bytes(0, c, hwc, x_itemsize, o_pad)
        per_row = max(1, (_footprint_bytes(8, c, hwc, x_itemsize, o_pad) - base) // 8)
        est = ((budget - base) // per_row // 8) * 8
        rt = min(top, max(8, est))
        while rt >= 8:
            if fits(rt, hwc):
                return rt
            rt -= 8
        return None

    # 1) Full-HW blocks, largest fitting batch tile.
    rt = best_row_tile(hw)
    if rt is not None:
        return rt, hw

    # 2) One sample's padded feature map alone exceeds the budget: split HW
    #    into lane-aligned chunks reduced through the VMEM accumulator.
    hw_chunk = max(128, (hw // 128) * 128)
    while True:
        rt = best_row_tile(hw_chunk)
        if rt is not None:
            return rt, hw_chunk
        if hw_chunk <= 128:
            break
        hw_chunk = max(128, ((hw_chunk // 2) // 128) * 128)

    # Best effort: minimum legal tile (vmem_limit bump usually covers this).
    return min(n, 8), min(hw, 128)


def cc_head_forward(x_nchw, weight_v, weight_g, scale_cls, *,
                    row_tile=None, hw_chunk=None):
    """x_nchw: (N, C, H, W); weight_v: (O, C); weight_g: (O, 1); scale_cls: (1,)."""
    N, C, H, W = x_nchw.shape
    O = weight_v.shape[0]
    HW = H * W

    # Free reshape of the contiguous NCHW tensor; no HBM transpose, no dtype copy.
    x = x_nchw.reshape(N, C, HW)

    # weight_norm(dim=0) effective weight with scale_cls folded in; one tiny
    # (O, C) prep done once, transposed to the canonical (K, N) MXU layout and
    # zero-padded so the kernel's output last dim is lane-dense (>=128).
    v = weight_v.astype(jnp.float32)
    g = weight_g.astype(jnp.float32).reshape(O, 1)
    s = jnp.reshape(scale_cls, ()).astype(jnp.float32)
    w_eff = v * (s * g * lax.rsqrt(jnp.sum(v * v, axis=1, keepdims=True)))  # (O, C)
    O_pad = max(128, _round_up(O, 128))
    w_t = jnp.zeros((C, O_pad), jnp.float32).at[:, :O].set(w_eff.T)          # (C, O_pad)

    # Per-generation VMEM plan: ~96 MiB scoped on v5e/v6e (128 MiB physical),
    # ~48 MiB on v7x (64 MiB physical).
    try:
        vmem_cap = int(pltpu.get_tpu_info().vmem_capacity_bytes)
    except Exception:
        vmem_cap = 64 * 1024 * 1024
    vmem_limit = min(int(vmem_cap * 0.75), 96 * 1024 * 1024)

    if row_tile is None or hw_chunk is None:
        rt, hwc = _choose_tiling(N, C, HW, x.dtype.itemsize, O_pad, vmem_limit)
        row_tile = row_tile if row_tile is not None else rt
        hw_chunk = hw_chunk if hw_chunk is not None else hwc

    grid = (pl.cdiv(N, row_tile), pl.cdiv(HW, hw_chunk))

    # Constant resident weight: for large class heads drop to a single buffer
    # so the freed VMEM goes to bigger x tiles.
    w_spec_kwargs = {}
    if _round_up(C, 8) * O_pad * 4 > (2 << 20):
        w_spec_kwargs["pipeline_mode"] = pl.Buffered(1)
    w_spec = pl.BlockSpec((C, O_pad), lambda i, h: (0, 0), **w_spec_kwargs)

    kernel = functools.partial(cc_head_kernel, hw_total=HW)

    out = pl.pallas_call(
        kernel,
        out_shape=jax.ShapeDtypeStruct((N, O_pad), jnp.float32),
        grid=grid,
        in_specs=[
            pl.BlockSpec((row_tile, C, hw_chunk), lambda i, h: (i, 0, h)),
            w_spec,
        ],
        out_specs=pl.BlockSpec((row_tile, O_pad), lambda i, h: (i, 0)),
        scratch_shapes=[pltpu.VMEM((row_tile, C), jnp.float32)],
        compiler_params=pltpu.CompilerParams(
            dimension_semantics=("parallel", "arbitrary"),
            vmem_limit_bytes=vmem_limit),
    )(x, w_t)

    return out[:, :O]


if __name__ == "__main__":
    # Small shapes consistent with the module: batch=2, channels(indim)=4,
    # spatial=16x16, outdim=8.
    N, C, H, W = 2, 4, 16, 16
    indim, outdim = C, 8

    key = jax.random.PRNGKey(0)
    kx, kw = jax.random.split(key)

    x = jax.random.normal(kx, (N, C, H, W), dtype=jnp.float32)

    # Deterministic parameter init (mimics nn.Linear weight + weight_norm split).
    bound = 1.0 / (indim ** 0.5)
    weight_v = jax.random.uniform(
        kw, (outdim, indim), minval=-bound, maxval=bound, dtype=jnp.float32)
    # weight_norm init: weight_g = ||weight_v||_row (dim=0 -> per output row).
    weight_g = jnp.sqrt(jnp.sum(weight_v * weight_v, axis=1, keepdims=True))
    scale_cls = jnp.array([10.0], dtype=jnp.float32)

    scores = cc_head_forward(x, weight_v, weight_g, scale_cls)
    jax.block_until_ready(scores)

    assert scores.shape == (N, outdim), scores.shape
    assert scores.dtype == jnp.float32

    # Pure-JAX reference of the same semantics (sanity check).
    def ref(xn, v, g, s):
        eps = 1e-12
        f = xn / jnp.maximum(jnp.sqrt(jnp.sum(xn * xn, axis=1, keepdims=True)), eps)
        p = jnp.mean(f, axis=(2, 3))
        p = p / jnp.maximum(jnp.sqrt(jnp.sum(p * p, axis=1, keepdims=True)), eps)
        w = v * (g / jnp.sqrt(jnp.sum(v * v, axis=1, keepdims=True)))
        return s[0] * (p @ w.T)

    expected = ref(x, weight_v, weight_g, scale_cls)
    max_err = jnp.max(jnp.abs(scores - expected))
    assert jnp.allclose(scores, expected, atol=1e-4, rtol=1e-4), max_err
    print("KERNEL_OK")
</pallas_src>

<mosaic_0001>
module attributes {stable_mosaic.version = 11 : i64} {
  func.func @cc_head_kernel(%arg0: i32, %arg1: i32, %arg2: memref<2x4x256xf32, #tpu.memory_space<vmem>>, %arg3: memref<4x128xf32, #tpu.memory_space<vmem>>, %arg4: memref<2x128xf32, #tpu.memory_space<vmem>>, %arg5: memref<2x4xf32, #tpu.memory_space<vmem>>) attributes {dimension_semantics = [#tpu.dimension_semantics<parallel>, #tpu.dimension_semantics<arbitrary>], iteration_bounds = array<i64: 1, 1>, scalar_prefetch = 0 : i64, scratch_operands = 1 : i64, tpu.core_type = #tpu.core_type<tc>, window_params = [{transform_indices = @transform_0, window_bounds = array<i64: 2, 4, 256>}, {pipeline_mode = #tpu.pipeline_mode<synchronous>, transform_indices = @transform_1, window_bounds = array<i64: 4, 128>}, {transform_indices = @transform_2, window_bounds = array<i64: 2, 128>}]} {
    %c0_i32 = arith.constant 0 : i32
    %0 = arith.cmpi eq, %arg1, %c0_i32 : i32
    %1 = arith.extui %0 : i1 to i32
    %c0_i32_0 = arith.constant 0 : i32
    %2 = arith.cmpi ne, %1, %c0_i32_0 : i32
    scf.if %2 {
      %cst_16 = arith.constant 0.000000e+00 : f32
      %30 = vector.broadcast %cst_16 : f32 to vector<2x4xf32>
      %c0_17 = arith.constant 0 : index
      %c0_18 = arith.constant 0 : index
      %31 = vector.load %arg5[%c0_17, %c0_18] : memref<2x4xf32, #tpu.memory_space<vmem>>, vector<2x4xf32>
      tpu.vector_store %arg5[%c0_17, %c0_18], %30 {strides = array<i32>} : memref<2x4xf32, #tpu.memory_space<vmem>>, vector<2x4xf32>,
    } else {
    }
    %c0 = arith.constant 0 : index
    %c0_1 = arith.constant 0 : index
    %c0_2 = arith.constant 0 : index
    %3 = vector.load %arg2[%c0, %c0_1, %c0_2] : memref<2x4x256xf32, #tpu.memory_space<vmem>>, vector<2x4x256xf32>
    %4 = arith.mulf %3, %3 : vector<2x4x256xf32>
    %cst = arith.constant dense<0.000000e+00> : vector<2x256xf32>
    %5 = vector.multi_reduction <add>, %4, %cst [1] : vector<2x4x256xf32> to vector<2x256xf32>
    %6 = vector.shape_cast %5 : vector<2x256xf32> to vector<2x1x256xf32>
    %cst_3 = arith.constant 1.000000e-24 : f32
    %7 = vector.broadcast %cst_3 : f32 to vector<2x1x256xf32>
    %8 = arith.maximumf %6, %7 : vector<2x1x256xf32>
    %9 = math.rsqrt %8 : vector<2x1x256xf32>
    %10 = tpu.iota {dimensions = array<i32: 2>} : vector<1x1x256xi32>
    %c256_i32 = arith.constant 256 : i32
    %11 = arith.muli %arg1, %c256_i32 : i32
    %12 = vector.broadcast %11 : i32 to vector<1x1x256xi32>
    %13 = arith.addi %12, %10 : vector<1x1x256xi32>
    %c256_i32_4 = arith.constant 256 : i32
    %14 = vector.broadcast %c256_i32_4 : i32 to vector<1x1x256xi32>
    %15 = arith.cmpi slt, %13, %14 : vector<1x1x256xi32>
    %c0_5 = arith.constant 0 : index
    %c0_6 = arith.constant 0 : index
    %c0_7 = arith.constant 0 : index
    %16 = vector.load %arg2[%c0_5, %c0_6, %c0_7] : memref<2x4x256xf32, #tpu.memory_space<vmem>>, vector<2x4x256xf32>
    %17 = vector.broadcast %9 : vector<2x1x256xf32> to vector<2x4x256xf32>
    %18 = arith.mulf %16, %17 : vector<2x4x256xf32>
    %cst_8 = arith.constant 0.000000e+00 : f32
    %19 = vector.shape_cast %15 : vector<1x1x256xi1> to vector<1x1x256xi1>
    %20 = vector.broadcast %19 : vector<1x1x256xi1> to vector<2x4x256xi1>
    %21 = vector.broadcast %cst_8 : f32 to vector<2x4x256xf32>
    %22 = arith.select %20, %18, %21 : vector<2x4x256xi1>, vector<2x4x256xf32>
    %c0_9 = arith.constant 0 : index
    %c0_10 = arith.constant 0 : index
    %23 = vector.load %arg5[%c0_9, %c0_10] : memref<2x4xf32, #tpu.memory_space<vmem>>, vector<2x4xf32>
    %cst_11 = arith.constant dense<0.000000e+00> : vector<2x4xf32>
    %24 = vector.multi_reduction <add>, %22, %cst_11 [2] : vector<2x4x256xf32> to vector<2x4xf32>
    %25 = arith.addf %23, %24 : vector<2x4xf32>
    %c0_12 = arith.constant 0 : index
    %c0_13 = arith.constant 0 : index
    %26 = vector.load %arg5[%c0_12, %c0_13] : memref<2x4xf32, #tpu.memory_space<vmem>>, vector<2x4xf32>
    tpu.vector_store %arg5[%c0_12, %c0_13], %25 {strides = array<i32>} : memref<2x4xf32, #tpu.memory_space<vmem>>, vector<2x4xf32>,
    %c0_i32_14 = arith.constant 0 : i32
    %27 = arith.cmpi eq, %arg1, %c0_i32_14 : i32
    %28 = arith.extui %27 : i1 to i32
    %c0_i32_15 = arith.constant 0 : i32
    %29 = arith.cmpi ne, %28, %c0_i32_15 : i32
    scf.if %29 {
      %c0_16 = arith.constant 0 : index
      %c0_17 = arith.constant 0 : index
      %30 = vector.load %arg5[%c0_16, %c0_17] : memref<2x4xf32, #tpu.memory_space<vmem>>, vector<2x4xf32>
      %31 = arith.mulf %30, %30 : vector<2x4xf32>
      %cst_18 = arith.constant dense<0.000000e+00> : vector<2xf32>
      %32 = vector.multi_reduction <add>, %31, %cst_18 [1] : vector<2x4xf32> to vector<2xf32>
      %33 = vector.shape_cast %32 : vector<2xf32> to vector<2x1xf32>
      %cst_19 = arith.constant 1.000000e-24 : f32
      %34 = vector.broadcast %cst_19 : f32 to vector<2x1xf32>
      %35 = arith.maximumf %33, %34 : vector<2x1xf32>
      %36 = math.rsqrt %35 : vector<2x1xf32>
      %37 = vector.broadcast %36 : vector<2x1xf32> to vector<2x4xf32>
      %38 = arith.mulf %30, %37 : vector<2x4xf32>
      %c0_20 = arith.constant 0 : index
      %c0_21 = arith.constant 0 : index
      %39 = vector.load %arg3[%c0_20, %c0_21] : memref<4x128xf32, #tpu.memory_space<vmem>>, vector<4x128xf32>
      %cst_22 = arith.constant dense<0.000000e+00> : vector<2x128xf32>
      %40 = tpu.matmul %38, %39, %cst_22 {dimension_numbers = #tpu.dot_dimension_numbers<[1], [0], [0], [1], [0, 0, 1, 1], [], []>} : vector<2x4xf32>, vector<4x128xf32>, vector<2x128xf32> -> vector<2x128xf32>
      %c0_23 = arith.constant 0 : index
      %c0_24 = arith.constant 0 : index
      %41 = vector.load %arg4[%c0_23, %c0_24] : memref<2x128xf32, #tpu.memory_space<vmem>>, vector<2x128xf32>
      tpu.vector_store %arg4[%c0_23, %c0_24], %40 {strides = array<i32>} : memref<2x128xf32, #tpu.memory_space<vmem>>, vector<2x128xf32>,
    } else {
    }
    return
  }
  func.func @transform_0(%arg0: i32, %arg1: i32) -> (i32, i32, i32) {
    %c0_i32 = arith.constant 0 : i32
    %c0_i32_0 = arith.constant 0 : i32
    return %arg0, %c0_i32, %arg1 : i32, i32, i32
  }
  func.func @transform_1(%arg0: i32, %arg1: i32) -> (i32, i32) {
    %c0_i32 = arith.constant 0 : i32
    %c0_i32_0 = arith.constant 0 : i32
    %c0_i32_1 = arith.constant 0 : i32
    return %c0_i32, %c0_i32_0 : i32, i32
  }
  func.func @transform_2(%arg0: i32, %arg1: i32) -> (i32, i32) {
    %c0_i32 = arith.constant 0 : i32
    %c0_i32_0 = arith.constant 0 : i32
    return %arg0, %c0_i32 : i32, i32
  }
}

</mosaic_0001>

<llo_original>
// kernel: tpu_custom_call.1
$region0: #{tpu_custom_call.1}
  #allocation0 [shape = 'u32[]', space=smem, size = 0x4, offset = 0x4, fixed_abs, tag = 'smem constant byte address 0x4 - core index']
  #allocation1 [shape = 'u32[72,128]{1,0:T(1,128)}', space=vmem, size = 0x9000, scoped, tag = 'internal scratch']
  #allocation2 [shape = 'f32[2,4]{1,0:T(2,128)}', space=vmem, size = 0x400, scoped, tag = 'scratch operand']
  %s0 = inlined_call_operand.hbm [shape: f32[2,4,256], index: 0, kind: input, shape index: {}]
  %s1 = inlined_call_operand.hbm [shape: f32[4,128], index: 1, kind: input, shape index: {}]
  %s2 = inlined_call_operand.hbm [shape: f32[2,128], index: 2, kind: output, shape index: {}]
  %s3 = sld [smem:[#allocation0]]
  $region34: #{tpu_custom_call.1} parent=0
    _
  %s5 = ssub.s32 1, %s3
  %s6 = scalar_select 0, %s5, %s3
  $region1: #{tpu_custom_call.1} parent=0
    #allocation3 [shape = 'u8[8192]{0}', space=vmem, size = 0x2000, scoped, tag = 'input window, operand 0, single buffered']
    #allocation4 [shape = 's32[1]{0}', space=sflag, size = 0x4, scoped, tag = 'scoped memory for tpu_custom_call.1']
    #allocation5 [shape = 's32[1]{0}', space=sflag, size = 0x4, scoped, tag = 'scoped memory for tpu_custom_call.1']
    #allocation6 [shape = 'u8[2048]{0}', space=vmem, size = 0x800, scoped, tag = 'input window, operand 1, single buffered']
    #allocation7 [shape = 's32[1]{0}', space=sflag, size = 0x4, scoped, tag = 'scoped memory for tpu_custom_call.1']
    #allocation8 [shape = 'u8[1024]{0}', space=vmem, size = 0x400, scoped, tag = 'output window, operand 0, single buffered']
    %7 = vsyncpa [#allocation4], 0
    %8 = vsyncpa [#allocation7], 0
    %9 = vsyncpa [#allocation5], 0
    // Predicated region
    $region2: #{tpu_custom_call.1} parent=1 // pred_check
      _
    $region3: #{tpu_custom_call.1} parent=1 // pred_check_branch
      %11 = sbr.rel (0) target = $region5
    $region4: #{tpu_custom_call.1} parent=1 // pred_region
      %13 = vsyncadd [#allocation4], 0
      %s14 = sshll.u32 %s0, 4
      %s15 = int_to_ptr.hbm [resolvable:$true] %s14
      %s16 = sshll.u32 [#allocation3], 4
      %s17 = int_to_ptr.vmem [resolvable:$true] %s16
      %22 = dma.hbm_to_vmem [thread:$0]  %s15, 256, %s17, [#allocation4], 128, 128, 8
    $region5: #{tpu_custom_call.1} parent=1 // pred_fallthru
      _
    // Predicated region
    $region6: #{tpu_custom_call.1} parent=1 // pred_check
      _
    $region7: #{tpu_custom_call.1} parent=1 // pred_check_branch
      %24 = sbr.rel (0) target = $region9
    $region8: #{tpu_custom_call.1} parent=1 // pred_region
      %26 = vsyncadd [#allocation7], 0
      %s28 = sshll.u32 %s1, 4
      %s29 = int_to_ptr.hbm [resolvable:$true] %s28
      %s30 = sshll.u32 [#allocation6], 4
      %s31 = int_to_ptr.vmem [resolvable:$true] %s30
      %33 = dma.hbm_to_vmem [thread:$0]  %s29, 64, %s31, [#allocation7]
    $region9: #{tpu_custom_call.1} parent=1 // pred_fallthru
      _
    // Predicated region
    $region10: #{tpu_custom_call.1} parent=1 // pred_check
      _
    $region11: #{tpu_custom_call.1} parent=1 // pred_check_branch
      %35 = sbr.rel (0) target = $region13
    $region12: #{tpu_custom_call.1} parent=1 // pred_region
      %37 = dma.done [#allocation4], 256
    $region13: #{tpu_custom_call.1} parent=1 // pred_fallthru
      _
    // Predicated region
    $region14: #{tpu_custom_call.1} parent=1 // pred_check
      _
    $region15: #{tpu_custom_call.1} parent=1 // pred_check_branch
      %39 = sbr.rel (0) target = $region17
    $region16: #{tpu_custom_call.1} parent=1 // pred_region
      %41 = dma.done [#allocation7], 64
    $region17: #{tpu_custom_call.1} parent=1 // pred_fallthru
      _
    %p42 = scmp.eq.s32.totalorder 0, 0
    // Predicated region
    $region18: #{tpu_custom_call.1} parent=1 // pred_check
      %p43 = pneg %p42
    $region19: #{tpu_custom_call.1} parent=1 // pred_check_branch
      %45 = sbr.rel (%p43) target = $region21
    $region20: #{tpu_custom_call.1} parent=1 // pred_region
      %vm46 = vcmask 25600
      %47 = vst.msk [vmem:[#allocation2] sm:$0x3] %vm46, 0.0
    $region21: #{tpu_custom_call.1} parent=1 // pred_fallthru
      _
    %v48 = vld [vmem:[#allocation3] sm:$0xff]
    %v49 = vld [vmem:[#allocation3 + $0x8] sm:$0xff]
    %v50 = vmul.f32 %v48, %v48
    %v51 = vmul.f32 %v49, %v49
    %54 = vst [vmem:[#allocation1] ss:$2 sm:$0xff] %v50
    %v55 = vld.sshfl [vmem:[#allocation1] sm:$0xff pattern:$0x75316420]
    %v56 = vld.sshfl [vmem:[#allocation1 + $0x8] sm:$0xff pattern:$0x75316420]
    %s57 = scalar_lea.vmem [#allocation1], 16
    %58 = vst [vmem:[%s57] ss:$2 sm:$0xff] %v51
    %v59 = vld.sshfl [vmem:[#allocation1 + $0x10] sm:$0xff pattern:$0x75316420]
    %v60 = vld.sshfl [vmem:[#allocation1 + $0x18] sm:$0xff pattern:$0x75316420]
    %vm65 = vcmask 1043456
    %v66 = vsel %vm65, %v55, 0.0
    %v67 = vrot.slane %v66, 4
    %v68 = vadd.f32 %v66, %v67
    %v69 = vrot.slane %v68, 2
    %v70 = vadd.f32 %v68, %v69
    %v71 = vrot.slane %v70, 1
    %v72 = vadd.f32 %v70, %v71
    %v73 = vsel %vm65, %v56, 0.0
    %v74 = vrot.slane %v73, 4
    %v75 = vadd.f32 %v73, %v74
    %v76 = vrot.slane %v75, 2
    %v77 = vadd.f32 %v75, %v76
    %v78 = vrot.slane %v77, 1
    %v79 = vadd.f32 %v77, %v78
    %v80 = vsel %vm65, %v59, 0.0
    %v81 = vrot.slane %v80, 4
    %v82 = vadd.f32 %v80, %v81
    %v83 = vrot.slane %v82, 2
    %v84 = vadd.f32 %v82, %v83
    %v85 = vrot.slane %v84, 1
    %v86 = vadd.f32 %v84, %v85
    %v87 = vsel %vm65, %v60, 0.0
    %v88 = vrot.slane %v87, 4
    %v89 = vadd.f32 %v87, %v88
    %v90 = vrot.slane %v89, 2
    %v91 = vadd.f32 %v89, %v90
    %v92 = vrot.slane %v91, 1
    %v93 = vadd.f32 %v91, %v92
    %v94 = vmax.f32 %v72, 1e-24
    %v95 = vmax.f32 %v79, 1e-24
    %v96 = vmax.f32 %v86, 1e-24
    %v97 = vmax.f32 %v93, 1e-24
    %v98 = vrsqrt.pop %v94
    %v99 = vmul.f32 %v98, %v94
    %v100 = vmul.f32 %v99, %v98
    %v101 = vmul.f32 0.5, %v100
    %v102 = vsub.f32 1.5, %v101
    %v103 = vmul.f32 %v98, %v102
    %vm104 = vweird.f32 %v94
    %vm105 = vweird.f32 %v98
    %vm106 = vmor %vm104, %vm105
    %v107 = vsel %vm106, %v98, %v103
    %v108 = vrsqrt.pop %v95
    %v109 = vmul.f32 %v108, %v95
    %v110 = vmul.f32 %v109, %v108
    %v111 = vmul.f32 0.5, %v110
    %v112 = vsub.f32 1.5, %v111
    %v113 = vmul.f32 %v108, %v112
    %vm114 = vweird.f32 %v95
    %vm115 = vweird.f32 %v108
    %vm116 = vmor %vm114, %vm115
    %v117 = vsel %vm116, %v108, %v113
    %v118 = vrsqrt.pop %v96
    %v119 = vmul.f32 %v118, %v96
    %v120 = vmul.f32 %v119, %v118
    %v121 = vmul.f32 0.5, %v120
    %v122 = vsub.f32 1.5, %v121
    %v123 = vmul.f32 %v118, %v122
    %vm124 = vweird.f32 %v96
    %vm125 = vweird.f32 %v118
    %vm126 = vmor %vm124, %vm125
    %v127 = vsel %vm126, %v118, %v123
    %v128 = vrsqrt.pop %v97
    %v129 = vmul.f32 %v128, %v97
    %v130 = vmul.f32 %v129, %v128
    %v131 = vmul.f32 0.5, %v130
    %v132 = vsub.f32 1.5, %v131
    %v133 = vmul.f32 %v128, %v132
    %vm134 = vweird.f32 %v97
    %vm135 = vweird.f32 %v128
    %vm136 = vmor %vm134, %vm135
    %v137 = vsel %vm136, %v128, %v133
    %v138 = vlaneseq
    %v139 = vand.u32 %v138, 127
    %v140 = vadd.s32 %v139, 128
    %s141 = smul.u32 0, 256
    %v142 = vstv %s141
    %v143 = vadd.s32 %v142, %v139
    %v144 = vadd.s32 %v142, %v140
    %vm145 = vcmp.lt.s32.totalorder %v143, 256
    %vm146 = vcmp.lt.s32.totalorder %v144, 256
    %v151 = vrot.slane %v117, 4
    %v152 = vrot.slane %v137, 4
    %v153 = vsel %vm65, %v107, %v151
    %v154 = vsel %vm65, %v127, %v152
    %v157 = vmul.f32 %v48, %v153
    %v158 = vmul.f32 %v49, %v154
    %v159 = vsel %vm145, 1, 0
    %v160 = vsel %vm146, 1, 0
    %vm161 = vcmp.eq.s32.totalorder %v159, 1
    %vm162 = vcmp.eq.s32.totalorder %v160, 1
    %165 = vst [vmem:[#allocation1] ss:$2 sm:$0xff] %v157
    %v166 = vld.sshfl [vmem:[#allocation1] sm:$0xff pattern:$0x75316420]
    %v167 = vld.sshfl [vmem:[#allocation1 + $0x8] sm:$0xff pattern:$0x75316420]
    %s168 = scalar_lea.vmem [#allocation1], 16
    %169 = vst [vmem:[%s168] ss:$2 sm:$0xff] %v158
    %v170 = vld.sshfl [vmem:[#allocation1 + $0x10] sm:$0xff pattern:$0x75316420]
    %v171 = vld.sshfl [vmem:[#allocation1 + $0x18] sm:$0xff pattern:$0x75316420]
    %v176 = vsel %vm161, %v166, 0.0
    %v177 = vsel %vm162, %v167, 0.0
    %v178 = vsel %vm161, %v170, 0.0
    %v179 = vsel %vm162, %v171, 0.0
    %v180 = vld [vmem:[#allocation2] sm:$0x3]
    %v181 = vsel %vm65, %v176, 0.0
    %v182 = vsel %vm65, %v177, 0.0
    %v183 = vadd.f32 %v181, %v182
    %184 = vadd.xlane.f32.xlu0 %v183
    %v185 = vpop.xlane.xlu0 %184
    %v186 = vsel %vm65, %v178, 0.0
    %v187 = vsel %vm65, %v179, 0.0
    %v188 = vadd.f32 %v186, %v187
    %189 = vadd.xlane.f32.xlu0 %v188
    %v190 = vpop.xlane.xlu0 %189
    %v193 = vperm.slane %v185, %v139
    %v194 = vperm.slane %v190, %v139
    %vm195 = vcmask 1041409
    %v196 = vsel %vm195, %v194, %v193
    %v198 = vadd.f32 %v180, %v196
    %vm199 = vcmask 25600
    %200 = vst.msk [vmem:[#allocation2] sm:$0x3] %vm199, %v198
    // Predicated region
    $region22: #{tpu_custom_call.1} parent=1 // pred_check
      %p201 = pneg %p42
    $region23: #{tpu_custom_call.1} parent=1 // pred_check_branch
      %203 = sbr.rel (%p201) target = $region25
    $region24: #{tpu_custom_call.1} parent=1 // pred_region
      %v204 = vld [vmem:[#allocation2] sm:$0x3]
      %v205 = vmul.f32 %v204, %v204
      %v206 = vsel %vm199, %v205, 0.0
      %207 = vadd.xlane.f32.xlu0 %v206
      %v208 = vpop.xlane.xlu0 %207
      %v209 = vmax.f32 %v208, 1e-24
      %v210 = vrsqrt.pop %v209
      %v211 = vmul.f32 %v210, %v209
      %v212 = vmul.f32 %v211, %v210
      %v213 = vmul.f32 0.5, %v212
      %v214 = vsub.f32 1.5, %v213
      %v215 = vmul.f32 %v210, %v214
      %vm216 = vweird.f32 %v209
      %vm217 = vweird.f32 %v210
      %vm218 = vmor %vm216, %vm217
      %v219 = vsel %vm218, %v210, %v215
      %v220 = vmul.f32 %v204, %v219
      %v221 = vld [vmem:[#allocation6] sm:$0xf]
      %vm222 = vcmask 31744
      %v224 = vsel %vm222, %v220, 0
      %v227 = vsel %vm65, %v221, 0
      %229 = vmatpush.msra.mxu0 0.0
      %230 = vmatpush.msra.mxu0 0.0
      %231 = vmatpush.msra.mxu0 0.0
      %232 = vmatpush.msra.mxu0 0.0
      %233 = vmatpush.msra.mxu0 0.0
      %234 = vmatpush.msra.mxu0 0.0
      %235 = vmatpush.msra.mxu0 0.0
      %236 = vmatpush.msra.mxu0 0.0
      %237 = vmatpush.msra.mxu0 0.0
      %238 = vmatpush.msra.mxu0 0.0
      %239 = vmatpush.msra.mxu0 0.0
      %240 = vmatpush.msra.mxu0 0.0
      %241 = vmatpush.msra.mxu0 0.0
      %242 = vmatpush.msra.mxu0 0.0
      %243 = vmatpush.msra.mxu0 0.0
      %244 = vmatpush.msra.mxu0 %v227
      %245 = vmatmul.f32.gmra.mxu0 %v224
      %v246 = vpop.f32.mrf.mxu0
      %v247 = vadd.f32 0.0, %v246
      %248 = vdwg.mxu0
      %249 = vst [vmem:[#allocation8] sm:$0x3] %v247
    $region25: #{tpu_custom_call.1} parent=1 // pred_fallthru
      _
    // Predicated region
    $region26: #{tpu_custom_call.1} parent=1 // pred_check
      _
    $region27: #{tpu_custom_call.1} parent=1 // pred_check_branch
      %251 = sbr.rel (0) target = $region29
    $region28: #{tpu_custom_call.1} parent=1 // pred_region
      %253 = vsyncadd [#allocation5], 0
      %s255 = sshll.u32 [#allocation8], 4
      %s256 = int_to_ptr.vmem [resolvable:$true] %s255
      %s257 = sshll.u32 %s2, 4
      %s258 = int_to_ptr.hbm [resolvable:$true] %s257
      %260 = dma.vmem_to_hbm [thread:$0]  %s256, 32, %s258, [#allocation5]
    $region29: #{tpu_custom_call.1} parent=1 // pred_fallthru
      _
    // Predicated region
    $region30: #{tpu_custom_call.1} parent=1 // pred_check
      _
    $region31: #{tpu_custom_call.1} parent=1 // pred_check_branch
      %262 = sbr.rel (0) target = $region33
    $region32: #{tpu_custom_call.1} parent=1 // pred_region
      %264 = dma.done [#allocation5], 32
    $region33: #{tpu_custom_call.1} parent=1 // pred_fallthru
      _
    %265 = vsyncpa [#allocation4], 1
    %266 = vsyncpa [#allocation7], 1
    %267 = vsyncpa [#allocation5], 1

</llo_original>
